<compile_context>
chip_gen: v5e
topology: v5e:2x2
jax: 0.10.0
libtpu: 0.0.40
codegen_flags: <defaults>
</compile_context>

<pallas_src>
import functools

import jax
import jax.numpy as jnp
from jax import lax
from jax.experimental import pallas as pl
from jax.experimental.pallas import tpu as pltpu

EPS = 1e-5  # PyTorch InstanceNorm2d default (affine=False, track_running_stats=False)


# -----------------------------------------------------------------------------
# One-time probe of pltpu.roll's rotate direction (tiny kernel, cached) so the
# tap shifts below are correct regardless of the sign convention.
# -----------------------------------------------------------------------------
_NP_ROLL = None


def _roll_is_numpy_convention():
    global _NP_ROLL
    if _NP_ROLL is None:
        def k(x_ref, o_ref):
            o_ref[...] = pltpu.roll(x_ref[...], 1, 1)

        x = jnp.arange(8 * 128, dtype=jnp.float32).reshape(8, 128)
        y = jax.block_until_ready(
            pl.pallas_call(k, out_shape=jax.ShapeDtypeStruct((8, 128), jnp.float32))(x))
        # np.roll convention: out[n] = in[n - shift]
        _NP_ROLL = bool(y[0, 1] == x[0, 0])
    return _NP_ROLL


# -----------------------------------------------------------------------------
# Kernel
# -----------------------------------------------------------------------------
def _resblock_kernel(x_ref, w1_ref, b1_ref, w2_ref, b2_ref, o_ref,
                     *, C, H, W, np_roll):
    HW = H * W
    x = x_ref[0]                                     # (C, HW) f32, lane-dense

    def roll_flat(t, shift):
        # Desired (np.roll) semantics: result[n] = t[(n - shift) mod HW].
        s = shift if np_roll else -shift
        return pltpu.roll(t, s % HW, 1)              # XLU lane rotate

    # Flat-index boundary masks implementing ReflectionPad2d(1) via roll+select.
    n = lax.broadcasted_iota(jnp.int32, (1, HW), 1)
    j = n % W
    first_col = j == 0
    last_col = j == W - 1
    first_row = n < W
    last_row = n >= (H - 1) * W

    def im2col(src):
        """src: (C, HW) f32 -> (9*C, HW) bf16, row blocks ordered (kh, kw)."""
        left = roll_flat(src, 1)                     # value at column j-1
        right = roll_flat(src, -1)                   # value at column j+1
        cols = (
            jnp.where(first_col, right, left),       # dw = -1 (reflect at j=0)
            src,                                     # dw =  0
            jnp.where(last_col, left, right),        # dw = +1 (reflect at j=W-1)
        )
        taps = {}
        for dw in (-1, 0, 1):
            g = cols[dw + 1]
            up = roll_flat(g, W)                     # row i-1
            down = roll_flat(g, -W)                  # row i+1
            taps[(-1, dw)] = jnp.where(first_row, down, up)   # reflect at i=0
            taps[(0, dw)] = g
            taps[(1, dw)] = jnp.where(last_row, up, down)     # reflect at i=H-1
        stacked = jnp.concatenate(
            [taps[(dh, dw)] for dh in (-1, 0, 1) for dw in (-1, 0, 1)], axis=0)
        return stacked.astype(jnp.bfloat16)          # bf16 operands for the MXU

    inv_hw = jnp.float32(1.0 / HW)

    def instance_norm(t):
        # One-pass stats + EUP rsqrt; everything stays f32.
        s1 = jnp.sum(t, axis=-1, keepdims=True)
        s2 = jnp.sum(t * t, axis=-1, keepdims=True)
        mean = s1 * inv_hw
        var = s2 * inv_hw - mean * mean
        return (t - mean) * lax.rsqrt(var + EPS)

    def conv3x3(src, w_ref, b_ref):
        # Single fused matmul: (C, 9C) @ (9C, HW), bf16 inputs, f32 accumulation.
        return jnp.dot(w_ref[...], im2col(src),
                       preferred_element_type=jnp.float32) + b_ref[...]

    h = jnp.maximum(instance_norm(conv3x3(x, w1_ref, b1_ref)), 0.0)   # ReLU
    # Dropout(0.5): identity in eval mode.
    y = instance_norm(conv3x3(h, w2_ref, b2_ref))

    o_ref[0] = x + y                                  # residual add, flat store


# -----------------------------------------------------------------------------
# Wrapper
# -----------------------------------------------------------------------------
def resnet_block(x, w1, b1, w2, b2):
    """x: (B, C, H, W) f32; w*: (C, C, 3, 3) PyTorch OIHW; b*: (C,)."""
    B, C, H, W = x.shape
    HW = H * W

    # Lane-dense image layout: trailing block dim is H*W (multiple of 128 here).
    x_flat = x.reshape(B, C, HW).astype(jnp.float32)

    def prep_w(w):
        # OIHW -> (C_out, kh, kw, C_in) -> (C_out, 9*C_in), stored as bf16.
        return jnp.transpose(w, (0, 2, 3, 1)).reshape(C, 9 * C).astype(jnp.bfloat16)

    w1m, w2m = prep_w(w1), prep_w(w2)
    b1c = b1.reshape(C, 1).astype(jnp.float32)
    b2c = b2.reshape(C, 1).astype(jnp.float32)

    kernel = functools.partial(_resblock_kernel, C=C, H=H, W=W,
                               np_roll=_roll_is_numpy_convention())

    img = pl.BlockSpec((1, C, HW), lambda b: (b, 0, 0))
    wspec = pl.BlockSpec((C, 9 * C), lambda b: (0, 0))
    bspec = pl.BlockSpec((C, 1), lambda b: (0, 0))

    out = pl.pallas_call(
        kernel,
        out_shape=jax.ShapeDtypeStruct((B, C, HW), jnp.float32),
        grid_spec=pltpu.PrefetchScalarGridSpec(
            num_scalar_prefetch=0,
            grid=(B,),
            in_specs=[img, wspec, bspec, wspec, bspec],
            out_specs=img,
        ),
        compiler_params=pltpu.CompilerParams(
            dimension_semantics=("parallel",),
            vmem_limit_bytes=64 * 1024 * 1024),
    )(x_flat, w1m, b1c, w2m, b2c)
    return out.reshape(B, C, H, W)


# -----------------------------------------------------------------------------
# Pure-JAX reference (matched precision: bf16 conv operands, f32 accumulation)
# -----------------------------------------------------------------------------
def resnet_block_ref(x, w1, b1, w2, b2):
    def conv(t, w, b):
        tp = jnp.pad(t, ((0, 0), (0, 0), (1, 1), (1, 1)), mode="reflect")
        y = lax.conv_general_dilated(
            tp.astype(jnp.bfloat16), w.astype(jnp.bfloat16),
            window_strides=(1, 1), padding="VALID",
            dimension_numbers=("NCHW", "OIHW", "NCHW"),
            preferred_element_type=jnp.float32)
        return y + b[None, :, None, None]

    def inorm(t):
        m = jnp.mean(t, axis=(2, 3), keepdims=True)
        v = jnp.var(t, axis=(2, 3), keepdims=True)
        return (t - m) / jnp.sqrt(v + EPS)

    h = jax.nn.relu(inorm(conv(x, w1, b1)))
    h = inorm(conv(h, w2, b2))
    return x + h


if __name__ == "__main__":
    B, C, H, W = 2, 4, 16, 16
    key = jax.random.PRNGKey(0)
    kx, kw1, kb1, kw2, kb2 = jax.random.split(key, 5)

    x = jax.random.normal(kx, (B, C, H, W), dtype=jnp.float32)
    w1 = 0.1 * jax.random.normal(kw1, (C, C, 3, 3), dtype=jnp.float32)
    b1 = 0.1 * jax.random.normal(kb1, (C,), dtype=jnp.float32)
    w2 = 0.1 * jax.random.normal(kw2, (C, C, 3, 3), dtype=jnp.float32)
    b2 = 0.1 * jax.random.normal(kb2, (C,), dtype=jnp.float32)

    out = jax.block_until_ready(resnet_block(x, w1, b1, w2, b2))
    ref = jax.block_until_ready(resnet_block_ref(x, w1, b1, w2, b2))

    assert out.shape == (B, C, H, W)
    err = float(jnp.max(jnp.abs(out - ref)))
    # bf16 MXU operands => allow ~1e-2-level absolute error vs the reference.
    assert err < 5e-2, f"mismatch vs JAX reference: max abs err {err}"

    print("KERNEL_OK")
</pallas_src>

<mosaic_0001>
module attributes {stable_mosaic.version = 11 : i64} {
  func.func @k(%arg0: memref<8x128xf32, #tpu.memory_space<vmem>>, %arg1: memref<8x128xf32, #tpu.memory_space<vmem>>) attributes {dimension_semantics = [], scalar_prefetch = 0 : i64, scratch_operands = 0 : i64, tpu.core_type = #tpu.core_type<tc>} {
    %c0 = arith.constant 0 : index
    %c0_0 = arith.constant 0 : index
    %0 = vector.load %arg0[%c0, %c0_0] : memref<8x128xf32, #tpu.memory_space<vmem>>, vector<8x128xf32>
    %c1_i32 = arith.constant 1 : i32
    %1 = tpu.dynamic_rotate %0 by %c1_i32 dim 1 : vector<8x128xf32>, i32 -> vector<8x128xf32>
    %c0_1 = arith.constant 0 : index
    %c0_2 = arith.constant 0 : index
    %2 = vector.load %arg1[%c0_1, %c0_2] : memref<8x128xf32, #tpu.memory_space<vmem>>, vector<8x128xf32>
    tpu.vector_store %arg1[%c0_1, %c0_2], %1 {strides = array<i32>} : memref<8x128xf32, #tpu.memory_space<vmem>>, vector<8x128xf32>,
    return
  }
}

</mosaic_0001>

<llo_original>
// kernel: tpu_custom_call.1
$region0: #{tpu_custom_call.1}
  #allocation0 [shape = 'u32[]', space=smem, size = 0x4, offset = 0x4, fixed_abs, tag = 'smem constant byte address 0x4 - core index']
  #allocation1 [shape = 'u32[72,128]{1,0:T(1,128)}', space=vmem, size = 0x9000, scoped, tag = 'internal scratch']
  %s0 = inlined_call_operand.hbm [shape: f32[8,128], index: 0, kind: input, shape index: {}]
  %s1 = inlined_call_operand.hbm [shape: f32[8,128], index: 1, kind: output, shape index: {}]
  %s2 = sld [smem:[#allocation0]]
  $region18: #{tpu_custom_call.1} parent=0
    _
  %s4 = ssub.s32 1, %s2
  %s5 = scalar_select 0, %s4, %s2
  $region1: #{tpu_custom_call.1} parent=0
    #allocation2 [shape = 'u8[4096]{0}', space=vmem, size = 0x1000, scoped, tag = 'input window, operand 0, single buffered']
    #allocation3 [shape = 's32[1]{0}', space=sflag, size = 0x4, scoped, tag = 'scoped memory for tpu_custom_call.1']
    #allocation4 [shape = 's32[1]{0}', space=sflag, size = 0x4, scoped, tag = 'scoped memory for tpu_custom_call.1']
    #allocation5 [shape = 'u8[4096]{0}', space=vmem, size = 0x1000, scoped, tag = 'output window, operand 0, single buffered']
    %6 = vsyncpa [#allocation3], 0
    %7 = vsyncpa [#allocation4], 0
    // Predicated region
    $region2: #{tpu_custom_call.1} parent=1 // pred_check
      _
    $region3: #{tpu_custom_call.1} parent=1 // pred_check_branch
      %9 = sbr.rel (0) target = $region5
    $region4: #{tpu_custom_call.1} parent=1 // pred_region
      %11 = vsyncadd [#allocation3], 0
      %s13 = sshll.u32 %s0, 4
      %s14 = int_to_ptr.hbm [resolvable:$true] %s13
      %s15 = sshll.u32 [#allocation2], 4
      %s16 = int_to_ptr.vmem [resolvable:$true] %s15
      %18 = dma.hbm_to_vmem [thread:$0]  %s14, 128, %s16, [#allocation3]
    $region5: #{tpu_custom_call.1} parent=1 // pred_fallthru
      _
    // Predicated region
    $region6: #{tpu_custom_call.1} parent=1 // pred_check
      _
    $region7: #{tpu_custom_call.1} parent=1 // pred_check_branch
      %20 = sbr.rel (0) target = $region9
    $region8: #{tpu_custom_call.1} parent=1 // pred_region
      %22 = dma.done [#allocation3], 128
    $region9: #{tpu_custom_call.1} parent=1 // pred_fallthru
      _
    %v23 = vld [vmem:[#allocation2] sm:$0xff]
    %24 = vrot.lane.b32.xlu0 %v23, 1
    %v25 = vpop.permute.xlu0 %24
    %26 = vst [vmem:[#allocation5] sm:$0xff] %v25
    // Predicated region
    $region10: #{tpu_custom_call.1} parent=1 // pred_check
      _
    $region11: #{tpu_custom_call.1} parent=1 // pred_check_branch
      %28 = sbr.rel (0) target = $region13
    $region12: #{tpu_custom_call.1} parent=1 // pred_region
      %30 = vsyncadd [#allocation4], 0
      %s32 = sshll.u32 [#allocation5], 4
      %s33 = int_to_ptr.vmem [resolvable:$true] %s32
      %s34 = sshll.u32 %s1, 4
      %s35 = int_to_ptr.hbm [resolvable:$true] %s34
      %37 = dma.vmem_to_hbm [thread:$0]  %s33, 128, %s35, [#allocation4]
    $region13: #{tpu_custom_call.1} parent=1 // pred_fallthru
      _
    // Predicated region
    $region14: #{tpu_custom_call.1} parent=1 // pred_check
      _
    $region15: #{tpu_custom_call.1} parent=1 // pred_check_branch
      %39 = sbr.rel (0) target = $region17
    $region16: #{tpu_custom_call.1} parent=1 // pred_region
      %41 = dma.done [#allocation4], 128
    $region17: #{tpu_custom_call.1} parent=1 // pred_fallthru
      _
    %42 = vsyncpa [#allocation3], 1
    %43 = vsyncpa [#allocation4], 1

</llo_original>
